<compile_context>
chip_gen: v7x
topology: tpu7x:2x2x1
jax: 0.10.0
libtpu: 0.0.40
codegen_flags: <defaults>
</compile_context>

<pallas_src>
import math
from functools import partial

import numpy as np
import jax
import jax.numpy as jnp
from jax.experimental import pallas as pl
from jax.experimental.pallas import tpu as pltpu


_VMEM = pl.BlockSpec(memory_space=pltpu.MemorySpace.VMEM)


# ----------------------------------------------------------------------------
# Kernel 1: fused GCN stack  (3 layers: in->H, H->H, H->1), tanh activations,
# output = concat([h1, h2, h3], axis=-1) padded to a 128-lane-dense store.
# ----------------------------------------------------------------------------
def gcn_stack_kernel(a_ref, x_ref, w1_ref, b1_ref, w2_ref, b2_ref,
                     w3_ref, b3_ref, out_ref, *, pad):
    a = a_ref[...]
    h1 = jnp.tanh(
        jnp.dot(a, jnp.dot(x_ref[...], w1_ref[...],
                           preferred_element_type=jnp.float32),
                preferred_element_type=jnp.float32) + b1_ref[...])
    h2 = jnp.tanh(
        jnp.dot(a, jnp.dot(h1, w2_ref[...], preferred_element_type=jnp.float32),
                preferred_element_type=jnp.float32) + b2_ref[...])
    # Layer 3 reassociated: (A @ h2) @ w3 keeps the expensive NxN matmul at
    # 8 output lanes instead of driving the MXU with a 1-lane-wide RHS.
    ah2 = jnp.dot(a, h2, preferred_element_type=jnp.float32)
    h3 = jnp.tanh(jnp.dot(ah2, w3_ref[...], preferred_element_type=jnp.float32)
                  + b3_ref[...])
    parts = [h1, h2, h3]
    if pad:
        parts.append(jnp.zeros((h1.shape[0], pad), jnp.float32))
    out_ref[...] = jnp.concatenate(parts, axis=-1)   # single lane-dense store


def gcn_stack(a_hat, x, params, hidden):
    # TODO(synk): for large N (v7x has 64 MiB VMEM), stream A row-tiles with a
    # grid + f32 accumulator instead of a resident dense NxN A_hat; bf16
    # operands (f32 accumulation) would buy another 2x headroom on v6e/v7x.
    n = x.shape[0]
    d_total = 2 * hidden + 1
    out_w = ((d_total + 127) // 128) * 128           # lane-dense output width
    padded = pl.pallas_call(
        partial(gcn_stack_kernel, pad=out_w - d_total),
        out_shape=jax.ShapeDtypeStruct((n, out_w), jnp.float32),
        in_specs=[_VMEM] * 8,
        out_specs=_VMEM,
    )(a_hat, x,
      params["w1"], params["b1"],
      params["w2"], params["b2"],
      params["w3"], params["b3"])
    return padded[:, :d_total]


# ----------------------------------------------------------------------------
# Kernel 2: CNN + MLP head, whole batch in one ungridded invocation.
#   conv1: Conv1d(1, 16, D, stride=D)  == one [P*B, D] @ [D, 16] matmul
#   maxpool1d(2, 2): elementwise max of even/odd sorted-node rows
#   conv2: Conv1d(16, 32, 5, 1)        == one K = 5*16 matmul per window
#   flatten: folded into a host-side permutation of wm1's rows
#   MLP [dense_dim, 128, 2]            == two batched matmuls
# ----------------------------------------------------------------------------
def head_kernel(xe_ref, xo_ref, wc1_ref, bc1_ref, wc2_ref, bc2_ref,
                wm1_ref, bm1_ref, wm2_ref, bm2_ref, out_ref, *, nb, l2, taps):
    wc1 = wc1_ref[...]
    bc1 = bc1_ref[...]
    # conv1 + relu, batched over every (pooled position, graph) row at once.
    he = jnp.maximum(
        jnp.dot(xe_ref[...], wc1, preferred_element_type=jnp.float32) + bc1, 0.0)
    ho = jnp.maximum(
        jnp.dot(xo_ref[...], wc1, preferred_element_type=jnp.float32) + bc1, 0.0)
    # MaxPool1d(2, 2): max of the even/odd node rows (relu commutes with max).
    p = jnp.maximum(he, ho)                          # [P*B, 16], row = pos*B + b

    # conv2 fused into one matmul: each output window gathers its 5 taps by
    # lane-concatenating contiguous [B, 16] row blocks -> K = taps*16.
    win = jnp.concatenate(
        [jnp.concatenate([p[(t + j) * nb:(t + j + 1) * nb, :]
                          for j in range(taps)], axis=-1)
         for t in range(l2)], axis=0)                # [l2*B, taps*16]
    c2 = jnp.maximum(
        jnp.dot(win, wc2_ref[...], preferred_element_type=jnp.float32)
        + bc2_ref[...], 0.0)                         # [l2*B, 32]

    # torch's channel-major flatten is folded into wm1's row order (host side),
    # so a plain window-major lane-concat suffices here (identity for l2 == 1).
    flat = jnp.concatenate([c2[t * nb:(t + 1) * nb, :] for t in range(l2)],
                           axis=-1)                  # [B, l2*32]

    m1 = jnp.maximum(
        jnp.dot(flat, wm1_ref[...], preferred_element_type=jnp.float32)
        + bm1_ref[...], 0.0)                         # [B, 128]
    # Dropout(0.5) is identity in eval mode.
    out_ref[...] = (jnp.dot(m1, wm2_ref[...], preferred_element_type=jnp.float32)
                    + bm2_ref[...])                  # single [B, 2] store


def head_forward(pooled, params):
    b, k, d = pooled.shape
    p_len = (k - 2) // 2 + 1                         # length after MaxPool1d(2,2)
    taps = 5
    l2 = p_len - taps + 1                            # conv2 output length

    # Wrapper-side layout plumbing (free): even/odd sorted nodes arranged
    # pooled-position-major -> row index = pos * B + graph.
    xe = pooled[:, 0:2 * p_len:2, :].transpose(1, 0, 2).reshape(p_len * b, d)
    xo = pooled[:, 1:2 * p_len:2, :].transpose(1, 0, 2).reshape(p_len * b, d)

    # Host-side weight reshuffles (free at runtime).
    wc2_flat = params["wc2"].reshape(taps * 16, 32)          # row = tap*16 + cin
    perm = np.array([(i % 32) * l2 + (i // 32) for i in range(l2 * 32)])
    wm1_perm = params["wm1"][perm, :]                # fold channel-major flatten

    return pl.pallas_call(
        partial(head_kernel, nb=b, l2=l2, taps=taps),
        out_shape=jax.ShapeDtypeStruct((b, 2), jnp.float32),
        in_specs=[_VMEM] * 10,
        out_specs=_VMEM,
    )(xe, xo,
      params["wc1"], params["bc1"], wc2_flat, params["bc2"],
      wm1_perm, params["bm1"], params["wm2"], params["bm2"])


# ----------------------------------------------------------------------------
# Glue: normalized adjacency and global_sort_pool (torch_geometric semantics).
# ----------------------------------------------------------------------------
def normalized_adj(edge_index, num_nodes):
    src, dst = edge_index
    a = jnp.zeros((num_nodes, num_nodes), jnp.float32)
    a = a.at[dst, src].set(1.0)
    a = a + jnp.eye(num_nodes, dtype=jnp.float32)    # add self loops
    deg = a.sum(axis=1)
    dinv = jnp.where(deg > 0, 1.0 / jnp.sqrt(deg), 0.0)
    return dinv[:, None] * a * dinv[None, :]


def global_sort_pool(x, batch, k, num_graphs):
    # TODO(synk): per-graph argsort/top-k is done in plain JAX (no clean Pallas sort).
    batch = np.asarray(batch)
    counts = np.bincount(batch, minlength=num_graphs)
    n_max = int(counts.max())
    offsets = np.concatenate([[0], np.cumsum(counts)[:-1]])
    pos = np.arange(batch.shape[0]) - offsets[batch]

    d = x.shape[1]
    dense = jnp.zeros((num_graphs, n_max, d), dtype=x.dtype)
    dense = dense.at[batch, pos].set(x)
    valid_np = np.zeros((num_graphs, n_max), dtype=bool)
    valid_np[batch, pos] = True
    valid = jnp.asarray(valid_np)

    # Sort by last channel, descending; padded rows get -inf key (sorted last).
    key = jnp.where(valid, dense[:, :, -1], -jnp.inf)
    order = jnp.argsort(-key, axis=1)
    dense = jnp.take_along_axis(dense, order[:, :, None], axis=1)
    valid = jnp.take_along_axis(valid, order, axis=1)
    dense = jnp.where(valid[:, :, None], dense, 0.0)  # explicit pad mask

    if n_max >= k:
        dense = dense[:, :k]
    else:
        dense = jnp.pad(dense, ((0, 0), (0, k - n_max), (0, 0)))
    return dense                                     # [B, k, D]


# ----------------------------------------------------------------------------
# Full forward.
# ----------------------------------------------------------------------------
def dgcnn_forward(x, edge_index, batch, params, *, hidden, k, num_graphs):
    a_hat = normalized_adj(edge_index, x.shape[0])
    feats = gcn_stack(a_hat, x, params, hidden)                  # Pallas kernel 1
    pooled = global_sort_pool(feats, batch, k, num_graphs)       # plain-JAX glue
    return head_forward(pooled, params)                          # Pallas kernel 2


if __name__ == "__main__":
    # Small, deterministic configuration consistent with the module.
    input_channel = 4
    hidden = 8
    num_layers = 2
    k = 10                       # k = max(10, ...) in __init__
    num_graphs = 2
    nodes_per_graph = 12
    N = num_graphs * nodes_per_graph

    d_total = hidden * num_layers + 1                 # 17
    pooled_len = int((k - 2) / 2 + 1)                 # 5
    l2 = pooled_len - 5 + 1                           # 1
    dense_dim = l2 * 32                               # 32

    key = jax.random.PRNGKey(0)
    ks = jax.random.split(key, 12)
    s = 0.1
    params = {
        # GCNConv stack
        "w1": s * jax.random.normal(ks[0], (input_channel, hidden), jnp.float32),
        "b1": s * jax.random.normal(ks[1], (1, hidden), jnp.float32),
        "w2": s * jax.random.normal(ks[2], (hidden, hidden), jnp.float32),
        "b2": s * jax.random.normal(ks[3], (1, hidden), jnp.float32),
        "w3": s * jax.random.normal(ks[4], (hidden, 1), jnp.float32),
        "b3": s * jax.random.normal(ks[5], (1, 1), jnp.float32),
        # Conv1d(1, 16, D, D)   -> [D, 16]
        "wc1": s * jax.random.normal(ks[6], (d_total, 16), jnp.float32),
        "bc1": s * jax.random.normal(ks[7], (1, 16), jnp.float32),
        # Conv1d(16, 32, 5, 1)  -> [5, 16, 32]  (tap, in_ch, out_ch)
        "wc2": s * jax.random.normal(ks[8], (5, 16, 32), jnp.float32),
        "bc2": s * jax.random.normal(ks[9], (1, 32), jnp.float32),
        # MLP [dense_dim, 128, 2]  (wm1 in torch's channel-major flatten order)
        "wm1": s * jax.random.normal(ks[10], (dense_dim, 128), jnp.float32),
        "bm1": jnp.zeros((1, 128), jnp.float32),
        "wm2": s * jax.random.normal(ks[11], (128, 2), jnp.float32),
        "bm2": jnp.zeros((1, 2), jnp.float32),
    }

    # Node features.
    x = jax.random.normal(jax.random.PRNGKey(1), (N, input_channel), jnp.float32)

    # Undirected ring within each graph (deterministic edge_index, no self loops).
    edges = []
    for g in range(num_graphs):
        base = g * nodes_per_graph
        for i in range(nodes_per_graph):
            a_, b_ = base + i, base + (i + 1) % nodes_per_graph
            edges.append((a_, b_))
            edges.append((b_, a_))
    edge_index = jnp.asarray(np.array(edges, dtype=np.int32).T)   # [2, E]
    batch = np.repeat(np.arange(num_graphs), nodes_per_graph)     # [N]

    logits = dgcnn_forward(x, edge_index, batch, params,
                           hidden=hidden, k=k, num_graphs=num_graphs)
    logits = jax.block_until_ready(logits)

    assert logits.shape == (num_graphs, 2), logits.shape
    assert bool(jnp.all(jnp.isfinite(logits)))
    print("KERNEL_OK")
</pallas_src>

<mosaic_0001>
module attributes {stable_mosaic.version = 11 : i64} {
  func.func @gcn_stack_kernel(%arg0: memref<24x24xf32, #tpu.memory_space<vmem>>, %arg1: memref<24x4xf32, #tpu.memory_space<vmem>>, %arg2: memref<4x8xf32, #tpu.memory_space<vmem>>, %arg3: memref<1x8xf32, #tpu.memory_space<vmem>>, %arg4: memref<8x8xf32, #tpu.memory_space<vmem>>, %arg5: memref<1x8xf32, #tpu.memory_space<vmem>>, %arg6: memref<8x1xf32, #tpu.memory_space<vmem>>, %arg7: memref<1x1xf32, #tpu.memory_space<vmem>>, %arg8: memref<24x128xf32, #tpu.memory_space<vmem>>) attributes {dimension_semantics = [], scalar_prefetch = 0 : i64, scratch_operands = 0 : i64, tpu.core_type = #tpu.core_type<tc>} {
    %c0 = arith.constant 0 : index
    %c0_0 = arith.constant 0 : index
    %0 = vector.load %arg0[%c0, %c0_0] : memref<24x24xf32, #tpu.memory_space<vmem>>, vector<24x24xf32>
    %c0_1 = arith.constant 0 : index
    %c0_2 = arith.constant 0 : index
    %1 = vector.load %arg1[%c0_1, %c0_2] : memref<24x4xf32, #tpu.memory_space<vmem>>, vector<24x4xf32>
    %c0_3 = arith.constant 0 : index
    %c0_4 = arith.constant 0 : index
    %2 = vector.load %arg2[%c0_3, %c0_4] : memref<4x8xf32, #tpu.memory_space<vmem>>, vector<4x8xf32>
    %cst = arith.constant dense<0.000000e+00> : vector<24x8xf32>
    %3 = tpu.matmul %1, %2, %cst {dimension_numbers = #tpu.dot_dimension_numbers<[1], [0], [0], [1], [0, 0, 1, 1], [], []>} : vector<24x4xf32>, vector<4x8xf32>, vector<24x8xf32> -> vector<24x8xf32>
    %cst_5 = arith.constant dense<0.000000e+00> : vector<24x8xf32>
    %4 = tpu.matmul %0, %3, %cst_5 {dimension_numbers = #tpu.dot_dimension_numbers<[1], [0], [0], [1], [0, 0, 1, 1], [], []>} : vector<24x24xf32>, vector<24x8xf32>, vector<24x8xf32> -> vector<24x8xf32>
    %c0_6 = arith.constant 0 : index
    %c0_7 = arith.constant 0 : index
    %5 = vector.load %arg3[%c0_6, %c0_7] : memref<1x8xf32, #tpu.memory_space<vmem>>, vector<1x8xf32>
    %6 = vector.broadcast %5 : vector<1x8xf32> to vector<24x8xf32>
    %7 = arith.addf %4, %6 : vector<24x8xf32>
    %8 = math.tanh %7 : vector<24x8xf32>
    %c0_8 = arith.constant 0 : index
    %c0_9 = arith.constant 0 : index
    %9 = vector.load %arg4[%c0_8, %c0_9] : memref<8x8xf32, #tpu.memory_space<vmem>>, vector<8x8xf32>
    %cst_10 = arith.constant dense<0.000000e+00> : vector<24x8xf32>
    %10 = tpu.matmul %8, %9, %cst_10 {dimension_numbers = #tpu.dot_dimension_numbers<[1], [0], [0], [1], [0, 0, 1, 1], [], []>} : vector<24x8xf32>, vector<8x8xf32>, vector<24x8xf32> -> vector<24x8xf32>
    %cst_11 = arith.constant dense<0.000000e+00> : vector<24x8xf32>
    %11 = tpu.matmul %0, %10, %cst_11 {dimension_numbers = #tpu.dot_dimension_numbers<[1], [0], [0], [1], [0, 0, 1, 1], [], []>} : vector<24x24xf32>, vector<24x8xf32>, vector<24x8xf32> -> vector<24x8xf32>
    %c0_12 = arith.constant 0 : index
    %c0_13 = arith.constant 0 : index
    %12 = vector.load %arg5[%c0_12, %c0_13] : memref<1x8xf32, #tpu.memory_space<vmem>>, vector<1x8xf32>
    %13 = vector.broadcast %12 : vector<1x8xf32> to vector<24x8xf32>
    %14 = arith.addf %11, %13 : vector<24x8xf32>
    %15 = math.tanh %14 : vector<24x8xf32>
    %cst_14 = arith.constant dense<0.000000e+00> : vector<24x8xf32>
    %16 = tpu.matmul %0, %15, %cst_14 {dimension_numbers = #tpu.dot_dimension_numbers<[1], [0], [0], [1], [0, 0, 1, 1], [], []>} : vector<24x24xf32>, vector<24x8xf32>, vector<24x8xf32> -> vector<24x8xf32>
    %c0_15 = arith.constant 0 : index
    %c0_16 = arith.constant 0 : index
    %17 = vector.load %arg6[%c0_15, %c0_16] : memref<8x1xf32, #tpu.memory_space<vmem>>, vector<8x1xf32>
    %cst_17 = arith.constant dense<0.000000e+00> : vector<24x1xf32>
    %18 = tpu.matmul %16, %17, %cst_17 {dimension_numbers = #tpu.dot_dimension_numbers<[1], [0], [0], [1], [0, 0, 1, 1], [], []>} : vector<24x8xf32>, vector<8x1xf32>, vector<24x1xf32> -> vector<24x1xf32>
    %c0_18 = arith.constant 0 : index
    %c0_19 = arith.constant 0 : index
    %19 = vector.load %arg7[%c0_18, %c0_19] : memref<1x1xf32, #tpu.memory_space<vmem>>, vector<1x1xf32>
    %20 = vector.broadcast %19 : vector<1x1xf32> to vector<24x1xf32>
    %21 = arith.addf %18, %20 : vector<24x1xf32>
    %22 = math.tanh %21 : vector<24x1xf32>
    %cst_20 = arith.constant 0.000000e+00 : f32
    %23 = vector.broadcast %cst_20 : f32 to vector<24x111xf32>
    %24 = tpu.concatenate %8, %15, %22, %23 in 1 : vector<24x8xf32>, vector<24x8xf32>, vector<24x1xf32>, vector<24x111xf32> -> vector<24x128xf32>
    %c0_21 = arith.constant 0 : index
    %c0_22 = arith.constant 0 : index
    %25 = vector.load %arg8[%c0_21, %c0_22] : memref<24x128xf32, #tpu.memory_space<vmem>>, vector<24x128xf32>
    tpu.vector_store %arg8[%c0_21, %c0_22], %24 {strides = array<i32>} : memref<24x128xf32, #tpu.memory_space<vmem>>, vector<24x128xf32>,
    return
  }
}

</mosaic_0001>

<llo_original>
// kernel: tpu_custom_call.1
$region0: #{tpu_custom_call.1}
  #allocation0 [shape = 'u32[]', space=smem, size = 0x4, offset = 0x4, fixed_abs, tag = 'smem constant byte address 0x4 - core index']
  #allocation1 [shape = 'u32[144,128]{1,0:T(1,128)}', space=vmem, size = 0x12000, scoped, tag = 'internal scratch']
  #allocation2 [shape = 'f32[1,1]{1,0:T(1,128)S(1)}', space=vmem, size = 0x200, scoped, tag = 'scoped memory for tpu_custom_call.1']
  %s0 = inlined_call_operand.vmem [shape: f32[24,24], index: 0, kind: input, shape index: {}]
  %s1 = inlined_call_operand.vmem [shape: f32[24,4], index: 1, kind: input, shape index: {}]
  %s2 = inlined_call_operand.vmem [shape: f32[4,8], index: 2, kind: input, shape index: {}]
  %s3 = inlined_call_operand.vmem [shape: f32[1,8], index: 3, kind: input, shape index: {}]
  %s4 = inlined_call_operand.vmem [shape: f32[8,8], index: 4, kind: input, shape index: {}]
  %s5 = inlined_call_operand.vmem [shape: f32[1,8], index: 5, kind: input, shape index: {}]
  %s6 = inlined_call_operand.vmem [shape: f32[8,1], index: 6, kind: input, shape index: {}]
  %s7 = inlined_call_operand.<no memory space> [shape: f32[1,1], index: 7, kind: input, shape index: {}]
  %s8 = inlined_call_operand.hbm [shape: f32[24,128], index: 8, kind: output, shape index: {}]
  %s9 = sld [smem:[#allocation0]]
  $region42: #{tpu_custom_call.1} parent=0
    _
  %s11 = ssub.s32 1, %s9
  %s12 = scalar_select 0, %s11, %s9
  %v13 = vstv %s7
  %14 = vst [vmem:[#allocation2] sm:$0x1] %v13
  $region1: #{tpu_custom_call.1} parent=0
    #allocation3 [shape = 'u8[12288]{0}', space=vmem, size = 0x3000, scoped, tag = 'output window, operand 0, single buffered']
    #allocation4 [shape = 's32[1]{0}', space=sflag, size = 0x4, scoped, tag = 'scoped memory for tpu_custom_call.1']
    %15 = vsyncpa [#allocation4], 0
    // Predicated region
    $region2: #{tpu_custom_call.1} parent=1 // pred_check
      _
    $region3: #{tpu_custom_call.1} parent=1 // pred_check_branch
      %17 = sbr.rel (0) target = $region5
    $region4: #{tpu_custom_call.1} parent=1 // pred_region
      _
    $region5: #{tpu_custom_call.1} parent=1 // pred_fallthru
      _
    // Predicated region
    $region6: #{tpu_custom_call.1} parent=1 // pred_check
      _
    $region7: #{tpu_custom_call.1} parent=1 // pred_check_branch
      %19 = sbr.rel (0) target = $region9
    $region8: #{tpu_custom_call.1} parent=1 // pred_region
      _
    $region9: #{tpu_custom_call.1} parent=1 // pred_fallthru
      _
    // Predicated region
    $region10: #{tpu_custom_call.1} parent=1 // pred_check
      _
    $region11: #{tpu_custom_call.1} parent=1 // pred_check_branch
      %21 = sbr.rel (0) target = $region13
    $region12: #{tpu_custom_call.1} parent=1 // pred_region
      _
    $region13: #{tpu_custom_call.1} parent=1 // pred_fallthru
      _
    // Predicated region
    $region14: #{tpu_custom_call.1} parent=1 // pred_check
      _
    $region15: #{tpu_custom_call.1} parent=1 // pred_check_branch
      %23 = sbr.rel (0) target = $region17
    $region16: #{tpu_custom_call.1} parent=1 // pred_region
      _
    $region17: #{tpu_custom_call.1} parent=1 // pred_fallthru
      _
    // Predicated region
    $region18: #{tpu_custom_call.1} parent=1 // pred_check
      _
    $region19: #{tpu_custom_call.1} parent=1 // pred_check_branch
      %25 = sbr.rel (0) target = $region21
    $region20: #{tpu_custom_call.1} parent=1 // pred_region
      _
    $region21: #{tpu_custom_call.1} parent=1 // pred_fallthru
      _
    // Predicated region
    $region22: #{tpu_custom_call.1} parent=1 // pred_check
      _
    $region23: #{tpu_custom_call.1} parent=1 // pred_check_branch
      %27 = sbr.rel (0) target = $region25
    $region24: #{tpu_custom_call.1} parent=1 // pred_region
      _
    $region25: #{tpu_custom_call.1} parent=1 // pred_fallthru
      _
    // Predicated region
    $region26: #{tpu_custom_call.1} parent=1 // pred_check
      _
    $region27: #{tpu_custom_call.1} parent=1 // pred_check_branch
      %29 = sbr.rel (0) target = $region29
    $region28: #{tpu_custom_call.1} parent=1 // pred_region
      _
    $region29: #{tpu_custom_call.1} parent=1 // pred_fallthru
      _
    // Predicated region
    $region30: #{tpu_custom_call.1} parent=1 // pred_check
      _
    $region31: #{tpu_custom_call.1} parent=1 // pred_check_branch
      %31 = sbr.rel (0) target = $region33
    $region32: #{tpu_custom_call.1} parent=1 // pred_region
      _
    $region33: #{tpu_custom_call.1} parent=1 // pred_fallthru
      _
    %v32 = vld [vmem:[%s0] sm:$0xff]
    %v33 = vld [vmem:[%s0 + $0x8] sm:$0xff]
    %v34 = vld [vmem:[%s0 + $0x10] sm:$0xff]
    %v35 = vld [vmem:[%s1] sm:$0xff]
    %v36 = vld [vmem:[%s1 + $0x8] sm:$0xff]
    %v37 = vld [vmem:[%s1 + $0x10] sm:$0xff]
    %v38 = vld [vmem:[%s2] sm:$0xf]
    %vm39 = vcmask 31744
    %v41 = vsel %vm39, %v35, 0
    %v44 = vsel %vm39, %v36, 0
    %v47 = vsel %vm39, %v37, 0
    %vm49 = vcmask 1043456
    %v51 = vsel %vm49, %v38, 0
    %53 = vmatprep.subr.mxu0 0.0
    %54 = vmatpush1.msra.mxu0 %v51
    %55 = vmatprep.subr.mxu0 0.0
    %56 = vmatpush1.msra.mxu0 0.0
    %57 = vmatprep.subr.mxu0 0.0
    %58 = vmatpush1.msra.mxu0 0.0
    %59 = vmatprep.subr.mxu0 0.0
    %60 = vmatpush1.msra.mxu0 0.0
    %61 = vmatprep.subr.mxu0 0.0
    %62 = vmatpush1.msra.mxu0 0.0
    %63 = vmatprep.subr.mxu0 0.0
    %64 = vmatpush1.msra.mxu0 0.0
    %65 = vmatprep.subr.mxu0 0.0
    %66 = vmatpush1.msra.mxu0 0.0
    %67 = vmatprep.subr.mxu0 0.0
    %68 = vmatpush1.msra.mxu0 0.0
    %69 = vmatprep.subr.mxu0 0.0
    %70 = vmatpush1.msra.mxu0 0.0
    %71 = vmatprep.subr.mxu0 0.0
    %72 = vmatpush1.msra.mxu0 0.0
    %73 = vmatprep.subr.mxu0 0.0
    %74 = vmatpush1.msra.mxu0 0.0
    %75 = vmatprep.subr.mxu0 0.0
    %76 = vmatpush1.msra.mxu0 0.0
    %77 = vmatprep.subr.mxu0 0.0
    %78 = vmatpush1.msra.mxu0 0.0
    %79 = vmatprep.subr.mxu0 0.0
    %80 = vmatpush1.msra.mxu0 0.0
    %81 = vmatprep.subr.mxu0 0.0
    %82 = vmatpush1.msra.mxu0 0.0
    %83 = vmatprep.subr.mxu0 0.0
    %84 = vmatpush1.msra.mxu0 0.0
    %85 = vmatprep.subr.mxu0 0.0
    %86 = vmatpush1.msra.mxu0 0.0
    %87 = vmatprep.subr.mxu0 0.0
    %88 = vmatpush1.msra.mxu0 0.0
    %89 = vmatprep.subr.mxu0 0.0
    %90 = vmatpush1.msra.mxu0 0.0
    %91 = vmatprep.subr.mxu0 0.0
    %92 = vmatpush1.msra.mxu0 0.0
    %93 = vmatprep.subr.mxu0 0.0
    %94 = vmatpush1.msra.mxu0 0.0
    %95 = vmatprep.subr.mxu0 0.0
    %96 = vmatpush1.msra.mxu0 0.0
    %97 = vmatprep.subr.mxu0 0.0
    %98 = vmatpush1.msra.mxu0 0.0
    %99 = vmatprep.subr.mxu0 0.0
    %100 = vmatpush1.msra.mxu0 0.0
    %101 = vmatprep.subr.mxu0 0.0
    %102 = vmatpush1.msra.mxu0 0.0
    %103 = vmatprep.subr.mxu0 0.0
    %104 = vmatpush1.msra.mxu0 0.0
    %105 = vmatprep.subr.mxu0 0.0
    %106 = vmatpush1.msra.mxu0 0.0
    %107 = vmatprep.subr.mxu0 0.0
    %108 = vmatpush1.msra.mxu0 0.0
    %109 = vmatprep.subr.mxu0 0.0
    %110 = vmatpush1.msra.mxu0 0.0
    %111 = vmatprep.subr.mxu0 0.0
    %112 = vmatpush1.msra.mxu0 0.0
    %113 = vmatprep.subr.mxu0 0.0
    %114 = vmatpush1.msra.mxu0 0.0
    %115 = vmatprep.subr.mxu0 0.0
    %116 = vmatpush1.msra.mxu0 0.0
    %117 = vmatprep.mubr.f32.mxu0 0.0
    %118 = vmatmul.mubr.f32.gmra.mrb[0].mxu0 %v41
    %v119 = vpop.f32.mrb[0].mxu0
    %v120 = vadd.f32 0.0, %v119
    %v121 = vpop.f32.mrb[0].mxu0
    %122 = vmatprep.mubr.f32.mxu0 0.0
    %123 = vmatmul.mubr.f32.gmra.mrb[0].mxu0 %v44
    %v124 = vpop.f32.mrb[0].mxu0
    %v125 = vadd.f32 0.0, %v124
    %v126 = vpop.f32.mrb[0].mxu0
    %127 = vmatprep.mubr.f32.mxu0 0.0
    %128 = vmatmul.mubr.f32.gmra.mrb[0].mxu0 %v47
    %v129 = vpop.f32.mrb[0].mxu0
    %v130 = vadd.f32 0.0, %v129
    %v131 = vpop.f32.mrb[0].mxu0
    %132 = vdwg.mxu0
    %v133 = vld [vmem:[%s3] sm:$0x1]
    %v135 = vlaneseq
    %v136 = vshrl.u32 %v135, 7
    %v137 = vsub.s32 0, %v136
    %v138 = vrot.slane %v133, %v137
    %vm140 = vcmask 195584
    %v142 = vsel %vm140, %v32, 0
    %v145 = vsel %vm140, %v33, 0
    %v148 = vsel %vm140, %v34, 0
    %150 = vmatprep.subr.mxu0 0.0
    %151 = vmatpush1.msra.mxu0 %v120
    %152 = vmatprep.subr.mxu0 0.0
    %153 = vmatpush1.msra.mxu0 %v125
    %154 = vmatprep.subr.mxu0 0.0
    %155 = vmatpush1.msra.mxu0 %v130
    %156 = vmatprep.subr.mxu0 0.0
    %157 = vmatpush1.msra.mxu0 0.0
    %158 = vmatprep.subr.mxu0 0.0
    %159 = vmatpush1.msra.mxu0 0.0
    %160 = vmatprep.subr.mxu0 0.0
    %161 = vmatpush1.msra.mxu0 0.0
    %162 = vmatprep.subr.mxu0 0.0
    %163 = vmatpush1.msra.mxu0 0.0
    %164 = vmatprep.subr.mxu0 0.0
    %165 = vmatpush1.msra.mxu0 0.0
    %166 = vmatprep.subr.mxu0 0.0
    %167 = vmatpush1.msra.mxu0 0.0
    %168 = vmatprep.subr.mxu0 0.0
    %169 = vmatpush1.msra.mxu0 0.0
    %170 = vmatprep.subr.mxu0 0.0
    %171 = vmatpush1.msra.mxu0 0.0
    %172 = vmatprep.subr.mxu0 0.0
    %173 = vmatpush1.msra.mxu0 0.0
    %174 = vmatprep.subr.mxu0 0.0
    %175 = vmatpush1.msra.mxu0 0.0
    %176 = vmatprep.subr.mxu0 0.0
    %177 = vmatpush1.msra.mxu0 0.0
    %178 = vmatprep.subr.mxu0 0.0
    %179 = vmatpush1.msra.mxu0 0.0
    %180 = vmatprep.subr.mxu0 0.0
    %181 = vmatpush1.msra.mxu0 0.0
    %182 = vmatprep.subr.mxu0 0.0
    %183 = vmatpush1.msra.mxu0 0.0
    %184 = vmatprep.subr.mxu0 0.0
    %185 = vmatpush1.msra.mxu0 0.0
    %186 = vmatprep.subr.mxu0 0.0
    %187 = vmatpush1.msra.mxu0 0.0
    %188 = vmatprep.subr.mxu0 0.0
    %189 = vmatpush1.msra.mxu0 0.0
    %190 = vmatprep.subr.mxu0 0.0
    %191 = vmatpush1.msra.mxu0 0.0
    %192 = vmatprep.subr.mxu0 0.0
    %193 = vmatpush1.msra.mxu0 0.0
    %194 = vmatprep.subr.mxu0 0.0
    %195 = vmatpush1.msra.mxu0 0.0
    %196 = vmatprep.subr.mxu0 0.0
    %197 = vmatpush1.msra.mxu0 0.0
    %198 = vmatprep.subr.mxu0 0.0
    %199 = vmatpush1.msra.mxu0 0.0
    %200 = vmatprep.subr.mxu0 0.0
    %201 = vmatpush1.msra.mxu0 0.0
    %202 = vmatprep.subr.mxu0 0.0
    %203 = vmatpush1.msra.mxu0 0.0
    %204 = vmatprep.subr.mxu0 0.0
    %205 = vmatpush1.msra.mxu0 0.0
    %206 = vmatprep.subr.mxu0 0.0
    %207 = vmatpush1.msra.mxu0 0.0
    %208 = vmatprep.subr.mxu0 0.0
    %209 = vmatpush1.msra.mxu0 0.0
    %210 = vmatprep.subr.mxu0 0.0
    %211 = vmatpush1.msra.mxu0 0.0
    %212 = vmatprep.subr.mxu0 0.0
    %213 = vmatpush1.msra.mxu0 0.0
    %214 = vmatprep.mubr.f32.mxu0 0.0
    %215 = vmatmul.mubr.f32.gmra.mrb[0].mxu0 %v142
    %v216 = vpop.f32.mrb[0].mxu0
    %v217 = vadd.f32 %v138, %v216
    %v218 = vpop.f32.mrb[0].mxu0
    %219 = vmatprep.mubr.f32.mxu0 0.0
    %220 = vmatmul.mubr.f32.gmra.mrb[0].mxu0 %v145
    %v221 = vpop.f32.mrb[0].mxu0
    %v222 = vadd.f32 %v138, %v221
    %v223 = vpop.f32.mrb[0].mxu0
    %224 = vmatprep.mubr.f32.mxu0 0.0
    %225 = vmatmul.mubr.f32.gmra.mrb[0].mxu0 %v148
    %v226 = vpop.f32.mrb[0].mxu0
    %v227 = vadd.f32 %v138, %v226
    %v228 = vpop.f32.mrb[0].mxu0
    %229 = vdwg.mxu0
    %v230 = vtanh.pop %v217
    %v231 = vtanh.pop %v222
    %v232 = vtanh.pop %v227
    %v233 = vld [vmem:[%s4] sm:$0xff]
    %vm234 = vcmask 64512
    %v236 = vsel %vm234, %v230, 0
    %v239 = vsel %vm234, %v231, 0
    %v242 = vsel %vm234, %v232, 0
    %244 = vmatprep.subr.mxu0 0.0
    %245 = vmatpush1.msra.mxu0 %v233
    %246 = vmatprep.subr.mxu0 0.0
    %247 = vmatpush1.msra.mxu0 0.0
    %248 = vmatprep.subr.mxu0 0.0
    %249 = vmatpush1.msra.mxu0 0.0
    %250 = vmatprep.subr.mxu0 0.0
    %251 = vmatpush1.msra.mxu0 0.0
    %252 = vmatprep.subr.mxu0 0.0
    %253 = vmatpush1.msra.mxu0 0.0
    %254 = vmatprep.subr.mxu0 0.0
    %255 = vmatpush1.msra.mxu0 0.0
    %256 = vmatprep.subr.mxu0 0.0
    %257 = vmatpush1.msra.mxu0 0.0
    %258 = vmatprep.subr.mxu0 0.0
    %259 = vmatpush1.msra.mxu0 0.0
    %260 = vmatprep.subr.mxu0 0.0
    %261 = vmatpush1.msra.mxu0 0.0
    %262 = vmatprep.subr.mxu0 0.0
    %263 = vmatpush1.msra.mxu0 0.0
    %264 = vmatprep.subr.mxu0 0.0
    %265 = vmatpush1.msra.mxu0 0.0
    %266 = vmatprep.subr.mxu0 0.0
    %267 = vmatpush1.msra.mxu0 0.0
    %268 = vmatprep.subr.mxu0 0.0
    %269 = vmatpush1.msra.mxu0 0.0
    %270 = vmatprep.subr.mxu0 0.0
    %271 = vmatpush1.msra.mxu0 0.0
    %272 = vmatprep.subr.mxu0 0.0
    %273 = vmatpush1.msra.mxu0 0.0
    %274 = vmatprep.subr.mxu0 0.0
    %275 = vmatpush1.msra.mxu0 0.0
    %276 = vmatprep.subr.mxu0 0.0
    %277 = vmatpush1.msra.mxu0 0.0
    %278 = vmatprep.subr.mxu0 0.0
    %279 = vmatpush1.msra.mxu0 0.0
    %280 = vmatprep.subr.mxu0 0.0
    %281 = vmatpush1.msra.mxu0 0.0
    %282 = vmatprep.subr.mxu0 0.0
    %283 = vmatpush1.msra.mxu0 0.0
    %284 = vmatprep.subr.mxu0 0.0
    %285 = vmatpush1.msra.mxu0 0.0
    %286 = vmatprep.subr.mxu0 0.0
    %287 = vmatpush1.msra.mxu0 0.0
    %288 = vmatprep.subr.mxu0 0.0
    %289 = vmatpush1.msra.mxu0 0.0
    %290 = vmatprep.subr.mxu0 0.0
    %291 = vmatpush1.msra.mxu0 0.0
    %292 = vmatprep.subr.mxu0 0.0
    %293 = vmatpush1.msra.mxu0 0.0
    %294 = vmatprep.subr.mxu0 0.0
    %295 = vmatpush1.msra.mxu0 0.0
    %296 = vmatprep.subr.mxu0 0.0
    %297 = vmatpush1.msra.mxu0 0.0
    %298 = vmatprep.subr.mxu0 0.0
    %299 = vmatpush1.msra.mxu0 0.0
    %300 = vmatprep.subr.mxu0 0.0
    %301 = vmatpush1.msra.mxu0 0.0
    %302 = vmatprep.subr.mxu0 0.0
    %303 = vmatpush1.msra.mxu0 0.0
    %304 = vmatprep.subr.mxu0 0.0
    %305 = vmatpush1.msra.mxu0 0.0
    %306 = vmatprep.subr.mxu0 0.0
    %307 = vmatpush1.msra.mxu0 0.0
    %308 = vmatprep.mubr.f32.mxu0 0.0
    %309 = vmatmul.mubr.f32.gmra.mrb[0].mxu0 %v236
    %v310 = vpop.f32.mrb[0].mxu0
    %v311 = vadd.f32 0.0, %v310
    %v312 = vpop.f32.mrb[0].mxu0
    %313 = vmatprep.mubr.f32.mxu0 0.0
    %314 = vmatmul.mubr.f32.gmra.mrb[0].mxu0 %v239
    %v315 = vpop.f32.mrb[0].mxu0
    %v316 = vadd.f32 0.0, %v315
    %v317 = vpop.f32.mrb[0].mxu0
    %318 = vmatprep.mubr.f32.mxu0 0.0
    %319 = vmatmul.mubr.f32.gmra.mrb[0].mxu0 %v242
    %v320 = vpop.f32.mrb[0].mxu0
    %v321 = vadd.f32 0.0, %v320
    %v322 = vpop.f32.mrb[0].mxu0
    %323 = vdwg.mxu0
    %v324 = vld [vmem:[%s5] sm:$0x1]
    %v326 = vlaneseq
    %v327 = vshrl.u32 %v326, 7
    %v328 = vsub.s32 0, %v327
    %v329 = vrot.slane %v324, %v328
    %331 = vmatprep.subr.mxu0 0.0
    %332 = vmatpush1.msra.mxu0 %v311
    %333 = vmatprep.subr.mxu0 0.0
    %334 = vmatpush1.msra.mxu0 %v316
    %335 = vmatprep.subr.mxu0 0.0
    %336 = vmatpush1.msra.mxu0 %v321
    %337 = vmatprep.subr.mxu0 0.0
    %338 = vmatpush1.msra.mxu0 0.0
    %339 = vmatprep.subr.mxu0 0.0
    %340 = vmatpush1.msra.mxu0 0.0
    %341 = vmatprep.subr.mxu0 0.0
    %342 = vmatpush1.msra.mxu0 0.0
    %343 = vmatprep.subr.mxu0 0.0
    %344 = vmatpush1.msra.mxu0 0.0
    %345 = vmatprep.subr.mxu0 0.0
    %346 = vmatpush1.msra.mxu0 0.0
    %347 = vmatprep.subr.mxu0 0.0
    %348 = vmatpush1.msra.mxu0 0.0
    %349 = vmatprep.subr.mxu0 0.0
    %350 = vmatpush1.msra.mxu0 0.0
    %351 = vmatprep.subr.mxu0 0.0
    %352 = vmatpush1.msra.mxu0 0.0
    %353 = vmatprep.subr.mxu0 0.0
    %354 = vmatpush1.msra.mxu0 0.0
    %355 = vmatprep.subr.mxu0 0.0
    %356 = vmatpush1.msra.mxu0 0.0
    %357 = vmatprep.subr.mxu0 0.0
    %358 = vmatpush1.msra.mxu0 0.0
    %359 = vmatprep.subr.mxu0 0.0
    %360 = vmatpush1.msra.mxu0 0.0
    %361 = vmatprep.subr.mxu0 0.0
    %362 = vmatpush1.msra.mxu0 0.0
    %363 = vmatprep.subr.mxu0 0.0
    %364 = vmatpush1.msra.mxu0 0.0
    %365 = vmatprep.subr.mxu0 0.0
    %366 = vmatpush1.msra.mxu0 0.0
    %367 = vmatprep.subr.mxu0 0.0
    %368 = vmatpush1.msra.mxu0 0.0
    %369 = vmatprep.subr.mxu0 0.0
    %370 = vmatpush1.msra.mxu0 0.0
    %371 = vmatprep.subr.mxu0 0.0
    %372 = vmatpush1.msra.mxu0 0.0
    %373 = vmatprep.subr.mxu0 0.0
    %374 = vmatpush1.msra.mxu0 0.0
    %375 = vmatprep.subr.mxu0 0.0
    %376 = vmatpush1.msra.mxu0 0.0
    %377 = vmatprep.subr.mxu0 0.0
    %378 = vmatpush1.msra.mxu0 0.0
    %379 = vmatprep.subr.mxu0 0.0
    %380 = vmatpush1.msra.mxu0 0.0
    %381 = vmatprep.subr.mxu0 0.0
    %382 = vmatpush1.msra.mxu0 0.0
    %383 = vmatprep.subr.mxu0 0.0
    %384 = vmatpush1.msra.mxu0 0.0
    %385 = vmatprep.subr.mxu0 0.0
    %386 = vmatpush1.msra.mxu0 0.0
    %387 = vmatprep.subr.mxu0 0.0
    %388 = vmatpush1.msra.mxu0 0.0
    %389 = vmatprep.subr.mxu0 0.0
    %390 = vmatpush1.msra.mxu0 0.0
    %391 = vmatprep.subr.mxu0 0.0
    %392 = vmatpush1.msra.mxu0 0.0
    %393 = vmatprep.subr.mxu0 0.0
    %394 = vmatpush1.msra.mxu0 0.0
    %395 = vmatprep.mubr.f32.mxu0 0.0
    %396 = vmatmul.mubr.f32.gmra.mrb[0].mxu0 %v142
    %v397 = vpop.f32.mrb[0].mxu0
    %v398 = vadd.f32 %v329, %v397
    %v399 = vpop.f32.mrb[0].mxu0
    %400 = vmatprep.mubr.f32.mxu0 0.0
    %401 = vmatmul.mubr.f32.gmra.mrb[0].mxu0 %v145
    %v402 = vpop.f32.mrb[0].mxu0
    %v403 = vadd.f32 %v329, %v402
    %v404 = vpop.f32.mrb[0].mxu0
    %405 = vmatprep.mubr.f32.mxu0 0.0
    %406 = vmatmul.mubr.f32.gmra.mrb[0].mxu0 %v148
    %v407 = vpop.f32.mrb[0].mxu0
    %v408 = vadd.f32 %v329, %v407
    %v409 = vpop.f32.mrb[0].mxu0
    %410 = vdwg.mxu0
    %v411 = vtanh.pop %v398
    %v412 = vtanh.pop %v403
    %v413 = vtanh.pop %v408
    %414 = vmatprep.subr.mxu0 0.0
    %415 = vmatpush1.msra.mxu0 %v411
    %416 = vmatprep.subr.mxu0 0.0
    %417 = vmatpush1.msra.mxu0 %v412
    %418 = vmatprep.subr.mxu0 0.0
    %419 = vmatpush1.msra.mxu0 %v413
    %420 = vmatprep.subr.mxu0 0.0
    %421 = vmatpush1.msra.mxu0 0.0
    %422 = vmatprep.subr.mxu0 0.0
    %423 = vmatpush1.msra.mxu0 0.0
    %424 = vmatprep.subr.mxu0 0.0
    %425 = vmatpush1.msra.mxu0 0.0
    %426 = vmatprep.subr.mxu0 0.0
    %427 = vmatpush1.msra.mxu0 0.0
    %428 = vmatprep.subr.mxu0 0.0
    %429 = vmatpush1.msra.mxu0 0.0
    %430 = vmatprep.subr.mxu0 0.0
    %431 = vmatpush1.msra.mxu0 0.0
    %432 = vmatprep.subr.mxu0 0.0
    %433 = vmatpush1.msra.mxu0 0.0
    %434 = vmatprep.subr.mxu0 0.0
    %435 = vmatpush1.msra.mxu0 0.0
    %436 = vmatprep.subr.mxu0 0.0
    %437 = vmatpush1.msra.mxu0 0.0
    %438 = vmatprep.subr.mxu0 0.0
    %439 = vmatpush1.msra.mxu0 0.0
    %440 = vmatprep.subr.mxu0 0.0
    %441 = vmatpush1.msra.mxu0 0.0
    %442 = vmatprep.subr.mxu0 0.0
    %443 = vmatpush1.msra.mxu0 0.0
    %444 = vmatprep.subr.mxu0 0.0
    %445 = vmatpush1.msra.mxu0 0.0
    %446 = vmatprep.subr.mxu0 0.0
    %447 = vmatpush1.msra.mxu0 0.0
    %448 = vmatprep.subr.mxu0 0.0
    %449 = vmatpush1.msra.mxu0 0.0
    %450 = vmatprep.subr.mxu0 0.0
    %451 = vmatpush1.msra.mxu0 0.0
    %452 = vmatprep.subr.mxu0 0.0
    %453 = vmatpush1.msra.mxu0 0.0
    %454 = vmatprep.subr.mxu0 0.0
    %455 = vmatpush1.msra.mxu0 0.0
    %456 = vmatprep.subr.mxu0 0.0
    %457 = vmatpush1.msra.mxu0 0.0
    %458 = vmatprep.subr.mxu0 0.0
    %459 = vmatpush1.msra.mxu0 0.0
    %460 = vmatprep.subr.mxu0 0.0
    %461 = vmatpush1.msra.mxu0 0.0
    %462 = vmatprep.subr.mxu0 0.0
    %463 = vmatpush1.msra.mxu0 0.0
    %464 = vmatprep.subr.mxu0 0.0
    %465 = vmatpush1.msra.mxu0 0.0
    %466 = vmatprep.subr.mxu0 0.0
    %467 = vmatpush1.msra.mxu0 0.0
    %468 = vmatprep.subr.mxu0 0.0
    %469 = vmatpush1.msra.mxu0 0.0
    %470 = vmatprep.subr.mxu0 0.0
    %471 = vmatpush1.msra.mxu0 0.0
    %472 = vmatprep.subr.mxu0 0.0
    %473 = vmatpush1.msra.mxu0 0.0
    %474 = vmatprep.subr.mxu0 0.0
    %475 = vmatpush1.msra.mxu0 0.0
    %476 = vmatprep.subr.mxu0 0.0
    %477 = vmatpush1.msra.mxu0 0.0
    %478 = vmatprep.mubr.f32.mxu0 0.0
    %479 = vmatmul.mubr.f32.gmra.mrb[0].mxu0 %v142
    %v480 = vpop.f32.mrb[0].mxu0
    %v481 = vadd.f32 0.0, %v480
    %v482 = vpop.f32.mrb[0].mxu0
    %483 = vmatprep.mubr.f32.mxu0 0.0
    %484 = vmatmul.mubr.f32.gmra.mrb[0].mxu0 %v145
    %v485 = vpop.f32.mrb[0].mxu0
    %v486 = vadd.f32 0.0, %v485
    %v487 = vpop.f32.mrb[0].mxu0
    %488 = vmatprep.mubr.f32.mxu0 0.0
    %489 = vmatmul.mubr.f32.gmra.mrb[0].mxu0 %v148
    %v490 = vpop.f32.mrb[0].mxu0
    %v491 = vadd.f32 0.0, %v490
    %v492 = vpop.f32.mrb[0].mxu0
    %493 = vdwg.mxu0
    %v494 = vld [vmem:[%s6] sm:$0xff]
    %v495 = vld [vmem:[#allocation2] sm:$0x1]
    %v497 = vlaneseq
    %v498 = vshrl.u32 %v497, 7
    %v499 = vsub.s32 0, %v498
    %v500 = vrot.slane %v495, %v499
    %v503 = vsel %vm234, %v481, 0
    %v506 = vsel %vm234, %v486, 0
    %v509 = vsel %vm234, %v491, 0
    %511 = vmatprep.subr.mxu0 0.0
    %512 = vmatpush1.msra.mxu0 %v494
    %513 = vmatprep.subr.mxu0 0.0
    %514 = vmatpush1.msra.mxu0 0.0
    %515 = vmatprep.subr.mxu0 0.0
    %516 = vmatpush1.msra.mxu0 0.0
    %517 = vmatprep.subr.mxu0 0.0
    %518 = vmatpush1.msra.mxu0 0.0
    %519 = vmatprep.subr.mxu0 0.0
    %520 = vmatpush1.msra.mxu0 0.0
    %521 = vmatprep.subr.mxu0 0.0
    %522 = vmatpush1.msra.mxu0 0.0
    %523 = vmatprep.subr.mxu0 0.0
    %524 = vmatpush1.msra.mxu0 0.0
    %525 = vmatprep.subr.mxu0 0.0
    %526 = vmatpush1.msra.mxu0 0.0
    %527 = vmatprep.subr.mxu0 0.0
    %528 = vmatpush1.msra.mxu0 0.0
    %529 = vmatprep.subr.mxu0 0.0
    %530 = vmatpush1.msra.mxu0 0.0
    %531 = vmatprep.subr.mxu0 0.0
    %532 = vmatpush1.msra.mxu0 0.0
    %533 = vmatprep.subr.mxu0 0.0
    %534 = vmatpush1.msra.mxu0 0.0
    %535 = vmatprep.subr.mxu0 0.0
    %536 = vmatpush1.msra.mxu0 0.0
    %537 = vmatprep.subr.mxu0 0.0
    %538 = vmatpush1.msra.mxu0 0.0
    %539 = vmatprep.subr.mxu0 0.0
    %540 = vmatpush1.msra.mxu0 0.0
    %541 = vmatprep.subr.mxu0 0.0
    %542 = vmatpush1.msra.mxu0 0.0
    %543 = vmatprep.subr.mxu0 0.0
    %544 = vmatpush1.msra.mxu0 0.0
    %545 = vmatprep.subr.mxu0 0.0
    %546 = vmatpush1.msra.mxu0 0.0
    %547 = vmatprep.subr.mxu0 0.0
    %548 = vmatpush1.msra.mxu0 0.0
    %549 = vmatprep.subr.mxu0 0.0
    %550 = vmatpush1.msra.mxu0 0.0
    %551 = vmatprep.subr.mxu0 0.0
    %552 = vmatpush1.msra.mxu0 0.0
    %553 = vmatprep.subr.mxu0 0.0
    %554 = vmatpush1.msra.mxu0 0.0
    %555 = vmatprep.subr.mxu0 0.0
    %556 = vmatpush1.msra.mxu0 0.0
    %557 = vmatprep.subr.mxu0 0.0
    %558 = vmatpush1.msra.mxu0 0.0
    %559 = vmatprep.subr.mxu0 0.0
    %560 = vmatpush1.msra.mxu0 0.0
    %561 = vmatprep.subr.mxu0 0.0
    %562 = vmatpush1.msra.mxu0 0.0
    %563 = vmatprep.subr.mxu0 0.0
    %564 = vmatpush1.msra.mxu0 0.0
    %565 = vmatprep.subr.mxu0 0.0
    %566 = vmatpush1.msra.mxu0 0.0
    %567 = vmatprep.subr.mxu0 0.0
    %568 = vmatpush1.msra.mxu0 0.0
    %569 = vmatprep.subr.mxu0 0.0
    %570 = vmatpush1.msra.mxu0 0.0
    %571 = vmatprep.subr.mxu0 0.0
    %572 = vmatpush1.msra.mxu0 0.0
    %573 = vmatprep.subr.mxu0 0.0
    %574 = vmatpush1.msra.mxu0 0.0
    %575 = vmatprep.mubr.f32.mxu0 0.0
    %576 = vmatmul.mubr.f32.gmra.mrb[0].mxu0 %v503
    %v577 = vpop.f32.mrb[0].mxu0
    %v578 = vadd.f32 %v500, %v577
    %v579 = vpop.f32.mrb[0].mxu0
    %580 = vmatprep.mubr.f32.mxu0 0.0
    %581 = vmatmul.mubr.f32.gmra.mrb[0].mxu0 %v506
    %v582 = vpop.f32.mrb[0].mxu0
    %v583 = vadd.f32 %v500, %v582
    %v584 = vpop.f32.mrb[0].mxu0
    %585 = vmatprep.mubr.f32.mxu0 0.0
    %586 = vmatmul.mubr.f32.gmra.mrb[0].mxu0 %v509
    %v587 = vpop.f32.mrb[0].mxu0
    %v588 = vadd.f32 %v500, %v587
    %v589 = vpop.f32.mrb[0].mxu0
    %590 = vdwg.mxu0
    %v591 = vtanh.pop %v578
    %v592 = vtanh.pop %v583
    %v593 = vtanh.pop %v588
    %597 = vrot.lane.b32.xlu0 %v411, 8
    %v598 = vpop.permute.xlu0 %597
    %599 = vrot.lane.b32.xlu0 %v412, 8
    %v600 = vpop.permute.xlu0 %599
    %601 = vrot.lane.b32.xlu0 %v413, 8
    %v602 = vpop.permute.xlu0 %601
    %609 = vrot.lane.b32.xlu0 %v591, 16
    %v610 = vpop.permute.xlu0 %609
    %611 = vrot.lane.b32.xlu0 %v592, 16
    %v612 = vpop.permute.xlu0 %611
    %613 = vrot.lane.b32.xlu0 %v593, 16
    %v614 = vpop.permute.xlu0 %613
    %v618 = vsel %vm234, %v230, %v598
    %v619 = vsel %vm234, %v231, %v600
    %v620 = vsel %vm234, %v232, %v602
    %vm621 = vcmask 130048
    %v622 = vsel %vm621, %v618, %v610
    %v623 = vsel %vm621, %v619, %v612
    %v624 = vsel %vm621, %v620, %v614
    %vm625 = vcmask 138240
    %v626 = vsel %vm625, %v622, 0.0
    %v627 = vsel %vm625, %v623, 0.0
    %v628 = vsel %vm625, %v624, 0.0
    %629 = vst [vmem:[#allocation3] sm:$0xff] %v626
    %630 = vst [vmem:[#allocation3 + $0x8] sm:$0xff] %v627
    %631 = vst [vmem:[#allocation3 + $0x10] sm:$0xff] %v628
    // Predicated region
    $region34: #{tpu_custom_call.1} parent=1 // pred_check
      _
    $region35: #{tpu_custom_call.1} parent=1 // pred_check_branch
      %633 = sbr.rel (0) target = $region37
    $region36: #{tpu_custom_call.1} parent=1 // pred_region
      %s635 = ssub.s32 384, 384
      %636 = vsyncadd [#allocation4], %s635
      %s637 = sshll.u32 [#allocation3], 4
      %s638 = int_to_ptr.vmem [resolvable:$true] %s637
      %643 = dma.vmem_to_hbm [thread:$0]  %s638, 384, %s8, [#allocation4], 128, 128, 8
    $region37: #{tpu_custom_call.1} parent=1 // pred_fallthru
      _
    // Predicated region
    $region38: #{tpu_custom_call.1} parent=1 // pred_check
      _
    $region39: #{tpu_custom_call.1} parent=1 // pred_check_branch
      %645 = sbr.rel (0) target = $region41
    $region40: #{tpu_custom_call.1} parent=1 // pred_region
      %646 = dma.done [#allocation4], 384
    $region41: #{tpu_custom_call.1} parent=1 // pred_fallthru
      _
    %647 = vsyncpa [#allocation4], 1

</llo_original>
